<compile_context>
chip_gen: v7x
topology: tpu7x:2x2x1
jax: 0.10.0
libtpu: 0.0.40
codegen_flags: <defaults>
</compile_context>

<pallas_src>
import functools

import jax
import jax.numpy as jnp
from jax import lax
from jax.experimental import pallas as pl
from jax.experimental.pallas import tpu as pltpu

EPS = 1e-5   # PyTorch BatchNorm2d default eps
VTH = 1.0    # IF neuron firing threshold


# ----------------------------------------------------------------------------
# small tiling helpers
# ----------------------------------------------------------------------------
def _pick_tile(total, target, align):
    """Largest divisor of `total` that is <= target and aligned (or == total)."""
    if total <= target:
        return total
    for d in range(target, 0, -1):
        if total % d == 0 and d % align == 0:
            return d
    return total


def _pick_nb(n_imgs, hw, target_rows=256, max_rows=2048):
    """Smallest divisor of n_imgs whose row count nb*hw reaches target_rows."""
    nb = 1
    for d in range(1, n_imgs + 1):
        if n_imgs % d != 0:
            continue
        if d * hw > max_rows:
            break
        nb = d
        if d * hw >= target_rows:
            break
    return nb


# ----------------------------------------------------------------------------
# Kernel 1: fused (folded) BatchNorm + IF spiking neuron over timesteps.
#   x: (T, M, WC) with M = B*H (tiled by tm) and WC = W*C (lane-dense last dim).
#   Grid = (M//tm, T); T is the inner "arbitrary" axis carrying the membrane
#   potential in a per-tile VMEM scratch (reset at t == 0 for every M tile).
# ----------------------------------------------------------------------------
def _bn_if_kernel(scale_ref, shift_ref, x_ref, out_ref, mem_ref):
    t = pl.program_id(1)

    @pl.when(t == 0)
    def _():
        mem_ref[...] = jnp.zeros_like(mem_ref)

    x = x_ref[0].astype(jnp.float32)                     # (tm, WC), f32 VPU math
    y = x * scale_ref[...] + shift_ref[...]              # folded BN: one FMA
    mem = mem_ref[...] + y
    spike = (mem >= VTH).astype(jnp.float32)
    mem_ref[...] = mem - spike * VTH                     # soft reset
    out_ref[0] = spike.astype(out_ref.dtype)             # spikes {0,1}: exact in bf16


def bn_if(x_tmwc, channels, gamma, beta, mean, var):
    T, M, WC = x_tmwc.shape
    W = WC // channels
    scale = (gamma.astype(jnp.float32) * lax.rsqrt(var.astype(jnp.float32) + EPS))
    shift = beta.astype(jnp.float32) - mean.astype(jnp.float32) * scale
    scale_wc = jnp.tile(scale, W).reshape(1, WC)         # per-(w,c) scale
    shift_wc = jnp.tile(shift, W).reshape(1, WC)

    tm = _pick_tile(M, 256, 8)
    grid = (M // tm, T)

    return pl.pallas_call(
        _bn_if_kernel,
        out_shape=jax.ShapeDtypeStruct((T, M, WC), jnp.bfloat16),
        grid_spec=pltpu.PrefetchScalarGridSpec(
            num_scalar_prefetch=0,
            grid=grid,
            in_specs=[
                pl.BlockSpec((1, WC), lambda m, t: (0, 0)),
                pl.BlockSpec((1, WC), lambda m, t: (0, 0)),
                pl.BlockSpec((1, tm, WC), lambda m, t: (t, m, 0)),
            ],
            out_specs=pl.BlockSpec((1, tm, WC), lambda m, t: (t, m, 0)),
            scratch_shapes=[pltpu.VMEM((tm, WC), jnp.float32)],
        ),
        compiler_params=pltpu.CompilerParams(
            dimension_semantics=("parallel", "arbitrary")),
    )(scale_wc, shift_wc, x_tmwc)


# ----------------------------------------------------------------------------
# Kernel 2: 3x3 conv (stride 1, padding 1, no bias), optional residual add.
#   nb images per grid step; in-kernel zero padding into a VMEM scratch; the 9
#   taps are concatenated along K -> single (nb*H*W, 9*Cin) x (9*Cin, Cout)
#   bf16 MXU matmul with an f32 accumulator.
# ----------------------------------------------------------------------------
def _conv_body(x_ref, w_ref, res_ref, out_ref, xpad_ref, H, W, Cin, Cout, nb):
    # zero-pad into VMEM scratch (re-zeroed every step: safe under megacore sharding)
    xpad_ref[...] = jnp.zeros_like(xpad_ref)
    xpad_ref[:, 1:H + 1, 1:W + 1, :] = x_ref[...].astype(xpad_ref.dtype)

    # im2col along K: (nb*H*W, 9*Cin)
    taps = [xpad_ref[:, dy:dy + H, dx:dx + W, :].reshape(nb * H * W, Cin)
            for dy in range(3) for dx in range(3)]
    patch = jnp.concatenate(taps, axis=1)

    acc = jnp.dot(patch, w_ref[...], preferred_element_type=jnp.float32)
    out = acc.reshape(nb, H, W, Cout)
    if res_ref is not None:
        out = out + res_ref[...].astype(jnp.float32)
    out_ref[...] = out.astype(out_ref.dtype)


def _conv3x3_kernel(x_ref, w_ref, out_ref, xpad_ref, *, H, W, Cin, Cout, nb):
    _conv_body(x_ref, w_ref, None, out_ref, xpad_ref, H, W, Cin, Cout, nb)


def _conv3x3_res_kernel(x_ref, w_ref, res_ref, out_ref, xpad_ref, *,
                        H, W, Cin, Cout, nb):
    _conv_body(x_ref, w_ref, res_ref, out_ref, xpad_ref, H, W, Cin, Cout, nb)


def _conv_call(kernel, x_nhwc_bf16, wk_bf16, res_bf16, Cout):
    N, H, W, Cin = x_nhwc_bf16.shape
    nb = _pick_nb(N, H * W)

    in_specs = [
        pl.BlockSpec((nb, H, W, Cin), lambda n: (n, 0, 0, 0)),
        pl.BlockSpec((9 * Cin, Cout), lambda n: (0, 0)),
    ]
    args = [x_nhwc_bf16, wk_bf16]
    if res_bf16 is not None:
        in_specs.append(pl.BlockSpec((nb, H, W, Cout), lambda n: (n, 0, 0, 0)))
        args.append(res_bf16)

    kern = functools.partial(kernel, H=H, W=W, Cin=Cin, Cout=Cout, nb=nb)
    return pl.pallas_call(
        kern,
        out_shape=jax.ShapeDtypeStruct((N, H, W, Cout), jnp.float32),
        grid_spec=pltpu.PrefetchScalarGridSpec(
            num_scalar_prefetch=0,
            grid=(N // nb,),
            in_specs=in_specs,
            out_specs=pl.BlockSpec((nb, H, W, Cout), lambda n: (n, 0, 0, 0)),
            scratch_shapes=[pltpu.VMEM((nb, H + 2, W + 2, Cin), jnp.bfloat16)],
        ),
        compiler_params=pltpu.CompilerParams(
            dimension_semantics=("parallel",)),
    )(*args)


def conv3x3(x_nhwc, w_hwio):
    Cin, Cout = w_hwio.shape[2], w_hwio.shape[3]
    wk = w_hwio.reshape(9 * Cin, Cout).astype(jnp.bfloat16)
    return _conv_call(_conv3x3_kernel, x_nhwc.astype(jnp.bfloat16), wk, None, Cout)


def conv3x3_add(x_nhwc, w_hwio, residual_nhwc):
    Cin, Cout = w_hwio.shape[2], w_hwio.shape[3]
    wk = w_hwio.reshape(9 * Cin, Cout).astype(jnp.bfloat16)
    return _conv_call(_conv3x3_res_kernel, x_nhwc.astype(jnp.bfloat16), wk,
                      residual_nhwc.astype(jnp.bfloat16), Cout)


# ----------------------------------------------------------------------------
# PreBasicBlock forward (stride=1, downsample=None)
# ----------------------------------------------------------------------------
def pre_basic_block_forward(x_nchw, params, timesteps):
    N, C, H, W = x_nchw.shape
    T = timesteps
    B = N // T
    x_nhwc = jnp.transpose(x_nchw, (0, 2, 3, 1)).astype(jnp.float32)

    # relu1(bn1(x))  — IF neuron over timesteps, lane-dense (T, B*H, W*C)
    s1 = bn_if(x_nhwc.reshape(T, B * H, W * C), C,
               params["bn1_gamma"], params["bn1_beta"],
               params["bn1_mean"], params["bn1_var"])           # bf16 spikes
    s1_nhwc = s1.reshape(N, H, W, C)

    planes = params["conv1_w"].shape[-1]

    # conv1 (no bias, NO residual stream)
    out1 = conv3x3(s1_nhwc, params["conv1_w"])                  # f32

    # relu2(bn2(out))
    s2 = bn_if(out1.reshape(T, B * H, W * planes), planes,
               params["bn2_gamma"], params["bn2_beta"],
               params["bn2_mean"], params["bn2_var"])           # bf16 spikes
    s2_nhwc = s2.reshape(N, H, W, planes)

    # conv2 + residual (downsample=None => residual = relu1(bn1(x)))
    out = conv3x3_add(s2_nhwc, params["conv2_w"], s1_nhwc)      # f32

    return jnp.transpose(out, (0, 3, 1, 2))                     # back to NCHW


# ----------------------------------------------------------------------------
# Pure-JAX reference (NCHW, f32) for correctness checking.
# ----------------------------------------------------------------------------
def _ref_bn(x, gamma, beta, mean, var):
    g = gamma.reshape(1, -1, 1, 1)
    b = beta.reshape(1, -1, 1, 1)
    mu = mean.reshape(1, -1, 1, 1)
    v = var.reshape(1, -1, 1, 1)
    return (x - mu) * lax.rsqrt(v + EPS) * g + b


def _ref_if(x, T):
    N = x.shape[0]
    B = N // T
    xt = x.reshape((T, B) + x.shape[1:])

    def step(mem, xi):
        mem = mem + xi
        spike = (mem >= VTH).astype(jnp.float32)
        return mem - spike * VTH, spike

    _, spikes = lax.scan(step, jnp.zeros_like(xt[0]), xt)
    return spikes.reshape(x.shape)


def _ref_conv3x3(x, w_hwio):
    return lax.conv_general_dilated(
        x, w_hwio, window_strides=(1, 1), padding=((1, 1), (1, 1)),
        dimension_numbers=("NCHW", "HWIO", "NCHW"),
        precision=lax.Precision.HIGHEST)


def ref_forward(x, params, T):
    s1 = _ref_if(_ref_bn(x, params["bn1_gamma"], params["bn1_beta"],
                         params["bn1_mean"], params["bn1_var"]), T)
    out = _ref_conv3x3(s1, params["conv1_w"])
    out = _ref_if(_ref_bn(out, params["bn2_gamma"], params["bn2_beta"],
                          params["bn2_mean"], params["bn2_var"]), T)
    out = _ref_conv3x3(out, params["conv2_w"])
    return out + s1


# ----------------------------------------------------------------------------
if __name__ == "__main__":
    T, B = 4, 2
    inplanes = planes = 16           # downsample=None requires inplanes == planes
    H = W = 8
    N = T * B

    key = jax.random.PRNGKey(0)
    keys = jax.random.split(key, 12)

    x = jax.random.normal(keys[0], (N, inplanes, H, W), jnp.float32)

    def _bf16_quant(w):  # the kernel feeds bf16 weights to the MXU; quantize once
        return w.astype(jnp.bfloat16).astype(jnp.float32)

    params = {
        "conv1_w": _bf16_quant(0.2 * jax.random.normal(
            keys[1], (3, 3, inplanes, planes), jnp.float32)),
        "conv2_w": _bf16_quant(0.2 * jax.random.normal(
            keys[2], (3, 3, planes, planes), jnp.float32)),
        "bn1_gamma": 1.0 + 0.1 * jax.random.normal(keys[3], (inplanes,), jnp.float32),
        "bn1_beta": 0.1 * jax.random.normal(keys[4], (inplanes,), jnp.float32),
        "bn1_mean": 0.1 * jax.random.normal(keys[5], (inplanes,), jnp.float32),
        "bn1_var": jax.random.uniform(keys[6], (inplanes,), jnp.float32, 0.5, 1.5),
        "bn2_gamma": 1.0 + 0.1 * jax.random.normal(keys[7], (planes,), jnp.float32),
        "bn2_beta": 0.1 * jax.random.normal(keys[8], (planes,), jnp.float32),
        "bn2_mean": 0.1 * jax.random.normal(keys[9], (planes,), jnp.float32),
        "bn2_var": jax.random.uniform(keys[10], (planes,), jnp.float32, 0.5, 1.5),
    }

    y = pre_basic_block_forward(x, params, timesteps=T)
    y = jax.block_until_ready(y)

    y_ref = jax.block_until_ready(ref_forward(x, params, T))
    assert y.shape == (N, planes, H, W)
    assert float(jnp.max(jnp.abs(y - y_ref))) < 1e-3

    print("KERNEL_OK")
</pallas_src>

<mosaic_0001>
module attributes {stable_mosaic.version = 11 : i64} {
  func.func @_bn_if_kernel(%arg0: i32, %arg1: i32, %arg2: memref<1x128xf32, #tpu.memory_space<vmem>>, %arg3: memref<1x128xf32, #tpu.memory_space<vmem>>, %arg4: memref<1x16x128xf32, #tpu.memory_space<vmem>>, %arg5: memref<1x16x128xbf16, #tpu.memory_space<vmem>>, %arg6: memref<16x128xf32, #tpu.memory_space<vmem>>) attributes {dimension_semantics = [#tpu.dimension_semantics<parallel>, #tpu.dimension_semantics<arbitrary>], iteration_bounds = array<i64: 1, 4>, scalar_prefetch = 0 : i64, scratch_operands = 1 : i64, tpu.core_type = #tpu.core_type<tc>, window_params = [{pipeline_mode = #tpu.pipeline_mode<synchronous>, transform_indices = @transform_0, window_bounds = array<i64: 1, 128>}, {pipeline_mode = #tpu.pipeline_mode<synchronous>, transform_indices = @transform_1, window_bounds = array<i64: 1, 128>}, {transform_indices = @transform_2, window_bounds = array<i64: 1, 16, 128>}, {transform_indices = @transform_3, window_bounds = array<i64: 1, 16, 128>}]} {
    %c0_i32 = arith.constant 0 : i32
    %0 = arith.cmpi eq, %arg1, %c0_i32 : i32
    %1 = arith.extui %0 : i1 to i32
    %c0_i32_0 = arith.constant 0 : i32
    %2 = arith.cmpi ne, %1, %c0_i32_0 : i32
    scf.if %2 {
      %cst_15 = arith.constant 0.000000e+00 : f32
      %25 = vector.broadcast %cst_15 : f32 to vector<16x128xf32>
      %c0_16 = arith.constant 0 : index
      %c0_17 = arith.constant 0 : index
      %26 = vector.load %arg6[%c0_16, %c0_17] : memref<16x128xf32, #tpu.memory_space<vmem>>, vector<16x128xf32>
      tpu.vector_store %arg6[%c0_16, %c0_17], %25 {strides = array<i32>} : memref<16x128xf32, #tpu.memory_space<vmem>>, vector<16x128xf32>,
    } else {
    }
    %c0 = arith.constant 0 : index
    %c0_1 = arith.constant 0 : index
    %c0_2 = arith.constant 0 : index
    %3 = vector.load %arg4[%c0, %c0_1, %c0_2] : memref<1x16x128xf32, #tpu.memory_space<vmem>>, vector<1x16x128xf32>
    %4 = vector.shape_cast %3 : vector<1x16x128xf32> to vector<16x128xf32>
    %c0_3 = arith.constant 0 : index
    %c0_4 = arith.constant 0 : index
    %5 = vector.load %arg2[%c0_3, %c0_4] : memref<1x128xf32, #tpu.memory_space<vmem>>, vector<1x128xf32>
    %6 = vector.broadcast %5 : vector<1x128xf32> to vector<16x128xf32>
    %7 = arith.mulf %4, %6 : vector<16x128xf32>
    %c0_5 = arith.constant 0 : index
    %c0_6 = arith.constant 0 : index
    %8 = vector.load %arg3[%c0_5, %c0_6] : memref<1x128xf32, #tpu.memory_space<vmem>>, vector<1x128xf32>
    %9 = vector.broadcast %8 : vector<1x128xf32> to vector<16x128xf32>
    %10 = arith.addf %7, %9 : vector<16x128xf32>
    %c0_7 = arith.constant 0 : index
    %c0_8 = arith.constant 0 : index
    %11 = vector.load %arg6[%c0_7, %c0_8] : memref<16x128xf32, #tpu.memory_space<vmem>>, vector<16x128xf32>
    %12 = arith.addf %11, %10 : vector<16x128xf32>
    %cst = arith.constant 1.000000e+00 : f32
    %13 = vector.broadcast %cst : f32 to vector<16x128xf32>
    %14 = arith.cmpf oge, %12, %13 : vector<16x128xf32>
    %15 = arith.extui %14 : vector<16x128xi1> to vector<16x128xi32>
    %16 = arith.sitofp %15 : vector<16x128xi32> to vector<16x128xf32>
    %cst_9 = arith.constant 1.000000e+00 : f32
    %17 = vector.broadcast %cst_9 : f32 to vector<16x128xf32>
    %18 = arith.mulf %16, %17 : vector<16x128xf32>
    %19 = arith.subf %12, %18 : vector<16x128xf32>
    %c0_10 = arith.constant 0 : index
    %c0_11 = arith.constant 0 : index
    %20 = vector.load %arg6[%c0_10, %c0_11] : memref<16x128xf32, #tpu.memory_space<vmem>>, vector<16x128xf32>
    tpu.vector_store %arg6[%c0_10, %c0_11], %19 {strides = array<i32>} : memref<16x128xf32, #tpu.memory_space<vmem>>, vector<16x128xf32>,
    %21 = arith.truncf %16 : vector<16x128xf32> to vector<16x128xbf16>
    %c0_12 = arith.constant 0 : index
    %c0_13 = arith.constant 0 : index
    %c0_14 = arith.constant 0 : index
    %22 = vector.load %arg5[%c0_12, %c0_13, %c0_14] : memref<1x16x128xbf16, #tpu.memory_space<vmem>>, vector<1x16x128xbf16>
    %23 = vector.shape_cast %22 : vector<1x16x128xbf16> to vector<16x128xbf16>
    %24 = vector.shape_cast %21 : vector<16x128xbf16> to vector<1x16x128xbf16>
    tpu.vector_store %arg5[%c0_12, %c0_13, %c0_14], %24 {strides = array<i32>} : memref<1x16x128xbf16, #tpu.memory_space<vmem>>, vector<1x16x128xbf16>,
    return
  }
  func.func @transform_0(%arg0: i32, %arg1: i32) -> (i32, i32) {
    %c0_i32 = arith.constant 0 : i32
    %c0_i32_0 = arith.constant 0 : i32
    %c0_i32_1 = arith.constant 0 : i32
    return %c0_i32, %c0_i32_0 : i32, i32
  }
  func.func @transform_1(%arg0: i32, %arg1: i32) -> (i32, i32) {
    %c0_i32 = arith.constant 0 : i32
    %c0_i32_0 = arith.constant 0 : i32
    %c0_i32_1 = arith.constant 0 : i32
    return %c0_i32, %c0_i32_0 : i32, i32
  }
  func.func @transform_2(%arg0: i32, %arg1: i32) -> (i32, i32, i32) {
    %c0_i32 = arith.constant 0 : i32
    %c0_i32_0 = arith.constant 0 : i32
    return %arg1, %arg0, %c0_i32 : i32, i32, i32
  }
  func.func @transform_3(%arg0: i32, %arg1: i32) -> (i32, i32, i32) {
    %c0_i32 = arith.constant 0 : i32
    %c0_i32_0 = arith.constant 0 : i32
    return %arg1, %arg0, %c0_i32 : i32, i32, i32
  }
}

</mosaic_0001>

<llo_original>
// kernel: tpu_custom_call.1
$region0: #{tpu_custom_call.1}
  #allocation0 [shape = 'u32[]', space=smem, size = 0x4, offset = 0x4, fixed_abs, tag = 'smem constant byte address 0x4 - core index']
  #allocation1 [shape = 'u32[144,128]{1,0:T(1,128)}', space=vmem, size = 0x12000, scoped, tag = 'internal scratch']
  #allocation2 [shape = 'f32[16,128]{1,0:T(8,128)}', space=vmem, size = 0x2000, scoped, tag = 'scratch operand']
  %s0 = inlined_call_operand.hbm [shape: f32[1,128], index: 0, kind: input, shape index: {}]
  %s1 = inlined_call_operand.vmem [shape: f32[1,128], index: 1, kind: input, shape index: {}]
  %s2 = inlined_call_operand.hbm [shape: f32[4,16,128], index: 2, kind: input, shape index: {}]
  %s3 = inlined_call_operand.hbm [shape: bf16[4,16,128], index: 3, kind: output, shape index: {}]
  %s4 = sld [smem:[#allocation0]]
  $region57: #{tpu_custom_call.1} parent=0
    _
  %s6 = ssub.s32 1, %s4
  %s7 = scalar_select 0, %s6, %s4
  $region1: #{tpu_custom_call.1} parent=0
    #allocation3 [shape = 'u8[512]{0}', space=vmem, size = 0x400, scoped, tag = 'input window, operand 0, single buffered']
    #allocation4 [shape = 's32[2]{0}', space=sflag, size = 0x8, scoped, tag = 'scoped memory for tpu_custom_call.1']
    #allocation5 [shape = 's32[2]{0}', space=sflag, size = 0x8, scoped, tag = 'scoped memory for tpu_custom_call.1']
    #allocation6 [shape = 'u8[16384]{0}', space=vmem, size = 0x4000, scoped, tag = 'input window, operand 2']
    #allocation7 [shape = 's32[2]{0}', space=sflag, size = 0x8, scoped, tag = 'scoped memory for tpu_custom_call.1']
    #allocation8 [shape = 'u8[8192]{0}', space=vmem, size = 0x2000, scoped, tag = 'output window, operand 0']
    %8 = vsyncpa [#allocation4], 0
    %9 = vsyncpa [#allocation7], 0
    %s10 = scalar_lea.sflag [#allocation7], 1
    %11 = vsyncpa %s10, 0
    %12 = vsyncpa [#allocation5], 0
    %s13 = scalar_lea.sflag [#allocation5], 1
    %14 = vsyncpa %s13, 0
    loop: start=0, step=1, limit=6
    $region2: #{tpu_custom_call.1} parent=1 // loop_pre_header
      _
    $region3: #{tpu_custom_call.1} parent=1 // loop_header
      %s16 = sphi 0, %s20
      %p17 = scmp.ge.s32.totalorder %s16, 6
      %s23 = sphi 0, %s35
      %s24 = sphi 0, %s31
      %s25 = sphi 0, %s23
      %s26 = sphi 0, %s24
      %s27 = sphi 0, %s25
      %s28 = sphi 0, %s26
      %s36 = sphi 0, %s36
      %s38 = sphi 0, %s36
      %s39 = sphi 0, %s38
      %s53 = sphi 0, %s39
      %s57 = sphi 0, %s57
      %s59 = sphi 0, %s57
      %s60 = sphi 0, %s59
      %s74 = sphi 0, %s60
      %s82 = sphi 0, %s84
      %s85 = sphi 0, %s82
      %s86 = sphi 0, %s85
      %s102 = sphi 0, %s86
      %s110 = sphi 0, %s112
      %s113 = sphi 0, %s110
      %s114 = sphi 0, %s113
      %s130 = sphi 0, %s114
    $region4: #{tpu_custom_call.1} parent=1 // loop_header_branch
      %19 = sbr.rel (%p17) target = $region8
    $region5: #{tpu_custom_call.1} parent=1 // loop_body
      %s21 = ssub.s32 %s16, 1
      %s22 = ssub.s32 %s16, 2
      %s29 = sadd.s32 1, %s24
      %p30 = scmp.ge.s32.totalorder %s29, 4
      %s31 = scalar_select %p30, 0, %s29
      %s32 = sadd.s32 1, %s23
      %s33 = scalar_select %p30, %s32, %s23
      %p34 = scmp.ge.s32.totalorder %s33, 1
      %s35 = scalar_select %p34, 0, %s33
      %s37 = sadd.s32 %s36, 1
      %p40 = scmp.eq.s32.totalorder %s16, 3
      %p41 = scmp.ne.s32.totalorder %s36, %s38
      %p42 = scmp.eq.s32.totalorder %s16, 0
      %p43 = por %p41, %p42
      %p44 = scmp.ne.s32.totalorder %s36, %s38
      %p45 = scmp.eq.s32.totalorder %s21, 3
      %p46 = por %p44, %p45
      %p47 = scmp.ne.s32.totalorder %s38, %s39
      %p48 = scmp.eq.s32.totalorder %s21, 0
      %p49 = por %p47, %p48
      %p50 = scmp.ne.s32.totalorder %s38, %s39
      %p51 = scmp.eq.s32.totalorder %s22, 3
      %p52 = por %p50, %p51
      %p54 = scmp.ne.s32.totalorder %s39, %s53
      %p55 = scmp.eq.s32.totalorder %s22, 0
      %p56 = por %p54, %p55
      %s58 = sadd.s32 %s57, 1
      %p61 = scmp.eq.s32.totalorder %s16, 3
      %p62 = scmp.ne.s32.totalorder %s57, %s59
      %p63 = scmp.eq.s32.totalorder %s16, 0
      %p64 = por %p62, %p63
      %p65 = scmp.ne.s32.totalorder %s57, %s59
      %p66 = scmp.eq.s32.totalorder %s21, 3
      %p67 = por %p65, %p66
      %p68 = scmp.ne.s32.totalorder %s59, %s60
      %p69 = scmp.eq.s32.totalorder %s21, 0
      %p70 = por %p68, %p69
      %p71 = scmp.ne.s32.totalorder %s59, %s60
      %p72 = scmp.eq.s32.totalorder %s22, 3
      %p73 = por %p71, %p72
      %p75 = scmp.ne.s32.totalorder %s60, %s74
      %p76 = scmp.eq.s32.totalorder %s22, 0
      %p77 = por %p75, %p76
      %s78 = ssub.s32 %s24, %s31
      %s79 = ssub.s32 %s23, %s35
      %s80 = sor.u32 %s78, %s79
      %p81 = scmp.eq.s32.totalorder %s80, 0
      %s83 = sadd.s32 %s82, 1
      %s84 = scalar_select %p81, %s82, %s83
      %p87 = pneg %p81
      %p88 = scmp.eq.s32.totalorder %s16, 3
      %p89 = por %p87, %p88
      %p90 = scmp.ne.s32.totalorder %s82, %s85
      %p91 = scmp.eq.s32.totalorder %s16, 0
      %p92 = por %p90, %p91
      %p93 = scmp.ne.s32.totalorder %s82, %s85
      %p94 = scmp.eq.s32.totalorder %s21, 3
      %p95 = por %p93, %p94
      %p96 = scmp.ne.s32.totalorder %s85, %s86
      %p97 = scmp.eq.s32.totalorder %s21, 0
      %p98 = por %p96, %p97
      %p99 = scmp.ne.s32.totalorder %s85, %s86
      %p100 = scmp.eq.s32.totalorder %s22, 3
      %p101 = por %p99, %p100
      %p103 = scmp.ne.s32.totalorder %s86, %s102
      %p104 = scmp.eq.s32.totalorder %s22, 0
      %p105 = por %p103, %p104
      %s106 = ssub.s32 %s24, %s31
      %s107 = ssub.s32 %s23, %s35
      %s108 = sor.u32 %s106, %s107
      %p109 = scmp.eq.s32.totalorder %s108, 0
      %s111 = sadd.s32 %s110, 1
      %s112 = scalar_select %p109, %s110, %s111
      %p115 = pneg %p109
      %p116 = scmp.eq.s32.totalorder %s16, 3
      %p117 = por %p115, %p116
      %p118 = scmp.ne.s32.totalorder %s110, %s113
      %p119 = scmp.eq.s32.totalorder %s16, 0
      %p120 = por %p118, %p119
      %p121 = scmp.ne.s32.totalorder %s110, %s113
      %p122 = scmp.eq.s32.totalorder %s21, 3
      %p123 = por %p121, %p122
      %p124 = scmp.ne.s32.totalorder %s113, %s114
      %p125 = scmp.eq.s32.totalorder %s21, 0
      %p126 = por %p124, %p125
      %p127 = scmp.ne.s32.totalorder %s113, %s114
      %p128 = scmp.eq.s32.totalorder %s22, 3
      %p129 = por %p127, %p128
      %p131 = scmp.ne.s32.totalorder %s114, %s130
      %p132 = scmp.eq.s32.totalorder %s22, 0
      %p133 = por %p131, %p132
      %p134 = scmp.le.s32.totalorder 1, %s16
      %p135 = scmp.lt.s32.totalorder %s16, 5
      %p136 = pnand %p134, %p135
      %p137 = pneg %p136
      // Predicated region
      $region9: #{tpu_custom_call.1} parent=5 // pred_check
        _
      $region10: #{tpu_custom_call.1} parent=5 // pred_check_branch
        %139 = sbr.rel (%p136) target = $region12
      $region11: #{tpu_custom_call.1} parent=5 // pred_region
        %s140 = ssub.s32 %s16, 1
        // Predicated region
        $region13: #{tpu_custom_call.1} parent=11 // pred_check
          %p141 = pneg %p49
        $region14: #{tpu_custom_call.1} parent=11 // pred_check_branch
          %143 = sbr.rel (%p141) target = $region16
        $region15: #{tpu_custom_call.1} parent=11 // pred_region
          %s145 = ssub.s32 16, 16
          %146 = vsyncadd [#allocation4], %s145
          %s148 = sshll.u32 [#allocation3], 4
          %s149 = int_to_ptr.vmem [resolvable:$true] %s148
          %151 = dma.hbm_to_vmem [thread:$0]  %s0, 16, %s149, [#allocation4]
        $region16: #{tpu_custom_call.1} parent=11 // pred_fallthru
          _
        // Predicated region
        $region17: #{tpu_custom_call.1} parent=11 // pred_check
          %p152 = pneg %p70
        $region18: #{tpu_custom_call.1} parent=11 // pred_check_branch
          %154 = sbr.rel (%p152) target = $region20
        $region19: #{tpu_custom_call.1} parent=11 // pred_region
          _
        $region20: #{tpu_custom_call.1} parent=11 // pred_fallthru
          _
      $region12: #{tpu_custom_call.1} parent=5 // pred_fallthru
        _
      %p155 = scmp.lt.s32.totalorder %s16, 4
      // Predicated region
      $region21: #{tpu_custom_call.1} parent=5 // pred_check
        %p156 = pneg %p155
      $region22: #{tpu_custom_call.1} parent=5 // pred_check_branch
        %158 = sbr.rel (%p156) target = $region24
      $region23: #{tpu_custom_call.1} parent=5 // pred_region
        // Predicated region
        $region25: #{tpu_custom_call.1} parent=23 // pred_check
          %p159 = pneg %p92
        $region26: #{tpu_custom_call.1} parent=23 // pred_check_branch
          %161 = sbr.rel (%p159) target = $region28
        $region27: #{tpu_custom_call.1} parent=23 // pred_region
          %s162 = sand.u32 %s82, 1
          %s163 = scalar_lea.sflag [#allocation7], %s162
          %s164 = sand.u32 %s82, 1
          %s165 = smul.addr %s164, 16
          %s166 = scalar_lea.vmem [#allocation6], %s165
          %s167 = smul.u32 2, %s23
          %s169 = ssub.s32 256, 256
          %170 = vsyncadd %s163, %s169
          %s171 = smul.addr %s24, 2
          %s172 = sadd.s32 %s167, %s171
          %s173 = smul.addr %s172, 128
          %s174 = scalar_lea.hbm %s2, %s173
          %s175 = sshll.u32 %s166, 4
          %s176 = int_to_ptr.vmem [resolvable:$true] %s175
          %181 = dma.hbm_to_vmem [thread:$0]  %s174, 256, %s176, %s163, 128, 128, 8
        $region28: #{tpu_custom_call.1} parent=23 // pred_fallthru
          _
      $region24: #{tpu_custom_call.1} parent=5 // pred_fallthru
        _
      %p182 = scmp.le.s32.totalorder 1, %s16
      %p183 = scmp.lt.s32.totalorder %s16, 5
      %p184 = pnand %p182, %p183
      %p185 = pneg %p184
      // Predicated region
      $region29: #{tpu_custom_call.1} parent=5 // pred_check
        _
      $region30: #{tpu_custom_call.1} parent=5 // pred_check_branch
        %187 = sbr.rel (%p184) target = $region32
      $region31: #{tpu_custom_call.1} parent=5 // pred_region
        %s188 = ssub.s32 %s16, 1
        // Predicated region
        $region33: #{tpu_custom_call.1} parent=31 // pred_check
          %p189 = pneg %p49
        $region34: #{tpu_custom_call.1} parent=31 // pred_check_branch
          %191 = sbr.rel (%p189) target = $region36
        $region35: #{tpu_custom_call.1} parent=31 // pred_region
          %192 = dma.done [#allocation4], 16
        $region36: #{tpu_custom_call.1} parent=31 // pred_fallthru
          _
        %s193 = sand.u32 %s85, 1
        %s194 = scalar_lea.sflag [#allocation7], %s193
        %s195 = sand.u32 %s85, 1
        %s196 = smul.addr %s195, 16
        %s197 = scalar_lea.vmem [#allocation6], %s196
        // Predicated region
        $region37: #{tpu_custom_call.1} parent=31 // pred_check
          %p198 = pneg %p98
        $region38: #{tpu_custom_call.1} parent=31 // pred_check_branch
          %200 = sbr.rel (%p198) target = $region40
        $region39: #{tpu_custom_call.1} parent=31 // pred_region
          %201 = dma.done %s194, 256
        $region40: #{tpu_custom_call.1} parent=31 // pred_fallthru
          _
        %p202 = pneg %p49
        %p203 = pneg %p46
        %p204 = pneg %p70
        %p205 = pneg %p67
        %s206 = sand.u32 %s85, 1
        %s207 = scalar_lea.sflag [#allocation7], %s206
        %s208 = sand.u32 %s85, 1
        %s209 = smul.addr %s208, 16
        %s210 = scalar_lea.vmem [#allocation6], %s209
        %p211 = pneg %p98
        %p212 = pneg %p95
        %p213 = pneg %p126
        %p214 = pneg %p123
        %s215 = sand.u32 %s113, 1
        %s216 = scalar_lea.sflag [#allocation5], %s215
        %s217 = sand.u32 %s113, 1
        %s218 = smul.addr %s217, 8
        %s219 = scalar_lea.vmem [#allocation8], %s218
        %s220 = smul.u32 2, %s25
        %s221 = smul.u32 2, %s25
        %p222 = scmp.eq.s32.totalorder %s26, 0
        // Predicated region
        $region41: #{tpu_custom_call.1} parent=31 // pred_check
          %p223 = pneg %p222
        $region42: #{tpu_custom_call.1} parent=31 // pred_check_branch
          %225 = sbr.rel (%p223) target = $region44
        $region43: #{tpu_custom_call.1} parent=31 // pred_region
          %226 = vst [vmem:[#allocation2] sm:$0xff] 0.0
          %227 = vst [vmem:[#allocation2 + $0x8] sm:$0xff] 0.0
        $region44: #{tpu_custom_call.1} parent=31 // pred_fallthru
          _
        %v228 = vld [vmem:[%s197] sm:$0xff]
        %v229 = vld [vmem:[%s197 + $0x8] sm:$0xff]
        %v230 = vld [vmem:[#allocation3] sm:$0x1]
        %v232 = vlaneseq
        %v233 = vshrl.u32 %v232, 7
        %v234 = vsub.s32 0, %v233
        %v235 = vrot.slane %v230, %v234
        %v237 = vmul.f32 %v228, %v235
        %v238 = vmul.f32 %v229, %v235
        %v239 = vld [vmem:[%s1] sm:$0x1]
        %v241 = vlaneseq
        %v242 = vshrl.u32 %v241, 7
        %v243 = vsub.s32 0, %v242
        %v244 = vrot.slane %v239, %v243
        %v246 = vadd.f32 %v237, %v244
        %v247 = vadd.f32 %v238, %v244
        %v248 = vld [vmem:[#allocation2] sm:$0xff]
        %v249 = vld [vmem:[#allocation2 + $0x8] sm:$0xff]
        %v250 = vadd.f32 %v248, %v246
        %v251 = vadd.f32 %v249, %v247
        %vm252 = vcmp.ge.f32.partialorder %v250, 1.0
        %vm253 = vcmp.ge.f32.partialorder %v251, 1.0
        %v254 = vsel %vm252, 1, 0
        %v255 = vsel %vm253, 1, 0
        %v256 = vcvt.s32.f32 %v254
        %v257 = vcvt.s32.f32 %v255
        %v258 = vsub.f32 %v250, %v256
        %v259 = vsub.f32 %v251, %v257
        %260 = vst [vmem:[#allocation2] sm:$0xff] %v258
        %261 = vst [vmem:[#allocation2 + $0x8] sm:$0xff] %v259
        %v262 = vpack.c.bf16 %v257, %v256
        %v264 = vunpack.c.l.b16 %v262
        %v265 = vunpack.c.h.b16 %v262
        %v266 = vpack.c.b16 %v264, %v264
        %v267 = vpack.c.b16 %v265, %v265
        %270 = vst [vmem:[%s219] sm:$0xf] %v266
        %271 = vst [vmem:[%s219 + $0x4] sm:$0xf] %v267
        %s272 = sand.u32 %s113, 1
        %s273 = scalar_lea.sflag [#allocation5], %s272
        %s274 = sand.u32 %s113, 1
        %s275 = smul.addr %s274, 8
        %s276 = scalar_lea.vmem [#allocation8], %s275
        // Predicated region
        $region45: #{tpu_custom_call.1} parent=31 // pred_check
          %p277 = pneg %p123
        $region46: #{tpu_custom_call.1} parent=31 // pred_check_branch
          %279 = sbr.rel (%p277) target = $region48
        $region47: #{tpu_custom_call.1} parent=31 // pred_region
          %s280 = smul.u32 2, %s25
          %s282 = ssub.s32 128, 128
          %283 = vsyncadd %s273, %s282
          %s284 = smul.addr %s26, 2
          %s285 = sadd.s32 %s280, %s284
          %s286 = smul.addr %s285, 64
          %s287 = scalar_lea.hbm %s3, %s286
          %s288 = sshll.u32 %s276, 4
          %s289 = int_to_ptr.vmem [resolvable:$true] %s288
          %294 = dma.vmem_to_hbm [thread:$0]  %s289, 128, %s287, %s273, 64, 64, 4
        $region48: #{tpu_custom_call.1} parent=31 // pred_fallthru
          _
      $region32: #{tpu_custom_call.1} parent=5 // pred_fallthru
        _
      %p295 = scmp.le.s32.totalorder 2, %s16
      // Predicated region
      $region49: #{tpu_custom_call.1} parent=5 // pred_check
        %p296 = pneg %p295
      $region50: #{tpu_custom_call.1} parent=5 // pred_check_branch
        %298 = sbr.rel (%p296) target = $region52
      $region51: #{tpu_custom_call.1} parent=5 // pred_region
        %s299 = ssub.s32 %s16, 2
        // Predicated region
        $region53: #{tpu_custom_call.1} parent=51 // pred_check
          %p300 = pneg %p129
        $region54: #{tpu_custom_call.1} parent=51 // pred_check_branch
          %302 = sbr.rel (%p300) target = $region56
        $region55: #{tpu_custom_call.1} parent=51 // pred_region
          %s303 = sand.u32 %s114, 1
          %s304 = scalar_lea.sflag [#allocation5], %s303
          %s305 = sand.u32 %s114, 1
          %s306 = smul.addr %s305, 8
          %s307 = scalar_lea.vmem [#allocation8], %s306
          %308 = dma.done %s304, 128
        $region56: #{tpu_custom_call.1} parent=51 // pred_fallthru
          _
      $region52: #{tpu_custom_call.1} parent=5 // pred_fallthru
        _
    $region6: #{tpu_custom_call.1} parent=1 // loop_footer
      %s20 = sadd.s32 1, %s16
    $region7: #{tpu_custom_call.1} parent=1 // loop_footer_branch
      %15 = sbr.rel target = $region3
    $region8: #{tpu_custom_call.1} parent=1 // loop_exit
      _
    %309 = vsyncpa [#allocation4], 1
    %s310 = scalar_lea.sflag [#allocation4], 1
    %311 = vsyncpa %s310, 1
    %312 = vsyncpa [#allocation7], 1
    %s313 = scalar_lea.sflag [#allocation7], 1
    %314 = vsyncpa %s313, 1
    %315 = vsyncpa [#allocation5], 1
    %s316 = scalar_lea.sflag [#allocation5], 1
    %317 = vsyncpa %s316, 1

</llo_original>
